<compile_context>
chip_gen: v7x
topology: tpu7x:2x2x1
jax: 0.10.0
libtpu: 0.0.40
codegen_flags: <defaults>
</compile_context>

<pallas_src>
import jax
import jax.numpy as jnp
from jax.experimental import pallas as pl
from jax.experimental.pallas import tpu as pltpu


_LANE = 128
_SMALL_VMEM_BYTES = 512 * 1024       # per-tensor cutoff for the fused whole-array path
_FUSED_GROUP_BYTES = 2 * 1024 * 1024  # per fused launch (x4 for in/out double buffers
                                      #  => <= 8 MiB VMEM, safe on v5e/v6e/v7x defaults)
_TILE_TARGET_BYTES = 1 * 1024 * 1024  # per-block target for the tiled large-tensor path


def _sublane(dtype) -> int:
    """Native packed sublane count for a dtype (8 for f32, 16 for bf16, 32 for int8)."""
    return {4: 8, 2: 16, 1: 32}.get(jnp.dtype(dtype).itemsize, 8)


def _padded_vmem_bytes(shape, dtype) -> int:
    """Bytes one whole-array VMEM block really occupies ((sublane,128) tile padding)."""
    itemsize = jnp.dtype(dtype).itemsize
    sub = _sublane(dtype)
    padded = list(shape)
    padded[-1] = -(-padded[-1] // _LANE) * _LANE
    if len(padded) >= 2:
        padded[-2] = -(-padded[-2] // sub) * sub
    n = 1
    for s in padded:
        n *= int(s)
    return n * itemsize


def _copy_kernel(x_ref, o_ref):
    # Whole-tile load/store: identity forward pass.
    o_ref[...] = x_ref[...]


def _copy_many_kernel(*refs):
    # Fused identity: first half are input refs, second half output refs.
    n = len(refs) // 2
    for i in range(n):
        refs[n + i][...] = refs[i][...]


def _zero_index_map(ndim):
    return lambda i: (0,) * ndim


def _identity_fused(tensors):
    """Single pallas_call copying several whole-array (single-block) tensors."""
    out_shapes = tuple(jax.ShapeDtypeStruct(t.shape, t.dtype) for t in tensors)
    in_specs = [pl.BlockSpec(t.shape, _zero_index_map(t.ndim)) for t in tensors]
    out_specs = [pl.BlockSpec(t.shape, _zero_index_map(t.ndim)) for t in tensors]
    outs = pl.pallas_call(
        _copy_many_kernel,
        out_shape=out_shapes,
        grid=(1,),
        in_specs=in_specs,
        out_specs=out_specs,
        compiler_params=pltpu.CompilerParams(
            dimension_semantics=("arbitrary",)),
    )(*tensors)
    return list(outs)


def _identity_tiled(x):
    """Tiled identity copy for tensors too large for a single VMEM block.

    Keeps the original shape (no reshape / relayout); greedily grows the block
    from the lane dim outward toward ~_TILE_TARGET_BYTES, respecting the
    (sublane, 128) alignment rules, and tiles the rest via the grid.
    """
    shape = x.shape
    ndim = x.ndim
    itemsize = jnp.dtype(x.dtype).itemsize
    sub = _sublane(x.dtype)
    target = max(1, _TILE_TARGET_BYTES // itemsize)   # padded elements per block

    block = [1] * ndim

    # Lane (last) dim: full if it fits, else a multiple of 128.
    if shape[-1] <= target:
        block[-1] = shape[-1]
    else:
        block[-1] = max(_LANE, (target // _LANE) * _LANE)
    per = -(-block[-1] // _LANE) * _LANE              # padded lane extent

    # Sublane (second-to-last) dim: full if it fits, else a multiple of the
    # dtype's packed sublane count.
    if ndim >= 2:
        fit = max(1, target // per)
        if shape[-2] <= fit:
            block[-2] = shape[-2]
        else:
            block[-2] = max(sub, (fit // sub) * sub)
            # If alignment pushed the block past the target, narrow the lane tile.
            if block[-2] * per > target and block[-1] > _LANE:
                block[-1] = max(_LANE, ((target // block[-2]) // _LANE) * _LANE)
                per = block[-1]
        per *= -(-block[-2] // sub) * sub

    # Leading dims: grow greedily while under the target, tile the rest.
    for d in range(ndim - 3, -1, -1):
        fit = max(1, target // per)
        block[d] = int(min(shape[d], fit))
        per *= block[d]

    block = tuple(int(b) for b in block)
    grid = tuple(pl.cdiv(int(shape[d]), block[d]) for d in range(ndim))
    spec = pl.BlockSpec(block, lambda *idx: idx)

    return pl.pallas_call(
        _copy_kernel,
        out_shape=jax.ShapeDtypeStruct(shape, x.dtype),
        grid=grid,
        in_specs=[spec],
        out_specs=spec,
        compiler_params=pltpu.CompilerParams(
            dimension_semantics=("parallel",) * ndim),
    )(x)


class BaseModelPallas:
    """Minimal concrete realization of BaseModel: dict -> dict identity."""

    def __init__(self):
        # BaseModel.__init__ registers no parameters.
        pass

    def forward(self, dict_inputs: dict) -> dict:
        results = {}
        fused_keys = []
        fused_bytes = 0

        def flush():
            nonlocal fused_keys, fused_bytes
            if fused_keys:
                outs = _identity_fused([dict_inputs[k] for k in fused_keys])
                for k, o in zip(fused_keys, outs):
                    results[k] = o
            fused_keys, fused_bytes = [], 0

        for k, v in dict_inputs.items():
            if v.ndim == 0 or v.size == 0:
                # Scalars / empty tensors: identity is the input itself.
                results[k] = v
                continue
            nbytes = _padded_vmem_bytes(v.shape, v.dtype)
            if nbytes > _SMALL_VMEM_BYTES:
                results[k] = _identity_tiled(v)
            else:
                if fused_bytes + nbytes > _FUSED_GROUP_BYTES:
                    flush()
                fused_keys.append(k)
                fused_bytes += nbytes
        flush()

        return {k: results[k] for k in dict_inputs}

    __call__ = forward


if __name__ == "__main__":
    key = jax.random.PRNGKey(0)
    k1, k2 = jax.random.split(key)
    # Small NCHW-style image tensor and a seq/hidden tensor, as a dict input.
    dict_inputs = {
        "x": jax.random.normal(k1, (2, 4, 16, 16), dtype=jnp.float32),
        "h": jax.random.normal(k2, (2, 8, 32), dtype=jnp.float32),
    }

    model = BaseModelPallas()
    out = model(dict_inputs)
    out = jax.tree_util.tree_map(jax.block_until_ready, out)

    # Sanity: identity forward must reproduce inputs exactly.
    for k in dict_inputs:
        assert out[k].shape == dict_inputs[k].shape
        assert out[k].dtype == dict_inputs[k].dtype
        assert bool(jnp.all(out[k] == dict_inputs[k]))

    print("KERNEL_OK")
</pallas_src>

<mosaic_0001>
module attributes {stable_mosaic.version = 11 : i64} {
  func.func @_copy_many_kernel(%arg0: i32, %arg1: memref<2x4x16x16xf32, #tpu.memory_space<vmem>>, %arg2: memref<2x8x32xf32, #tpu.memory_space<vmem>>, %arg3: memref<2x4x16x16xf32, #tpu.memory_space<vmem>>, %arg4: memref<2x8x32xf32, #tpu.memory_space<vmem>>) attributes {dimension_semantics = [#tpu.dimension_semantics<arbitrary>], iteration_bounds = array<i64: 1>, scalar_prefetch = 0 : i64, scratch_operands = 0 : i64, tpu.core_type = #tpu.core_type<tc>, window_params = [{pipeline_mode = #tpu.pipeline_mode<synchronous>, transform_indices = @transform_0, window_bounds = array<i64: 2, 4, 16, 16>}, {pipeline_mode = #tpu.pipeline_mode<synchronous>, transform_indices = @transform_1, window_bounds = array<i64: 2, 8, 32>}, {pipeline_mode = #tpu.pipeline_mode<synchronous>, transform_indices = @transform_2, window_bounds = array<i64: 2, 4, 16, 16>}, {pipeline_mode = #tpu.pipeline_mode<synchronous>, transform_indices = @transform_3, window_bounds = array<i64: 2, 8, 32>}]} {
    %c0 = arith.constant 0 : index
    %c0_0 = arith.constant 0 : index
    %c0_1 = arith.constant 0 : index
    %c0_2 = arith.constant 0 : index
    %0 = vector.load %arg1[%c0, %c0_0, %c0_1, %c0_2] : memref<2x4x16x16xf32, #tpu.memory_space<vmem>>, vector<2x4x16x16xf32>
    %c0_3 = arith.constant 0 : index
    %c0_4 = arith.constant 0 : index
    %c0_5 = arith.constant 0 : index
    %c0_6 = arith.constant 0 : index
    %1 = vector.load %arg3[%c0_3, %c0_4, %c0_5, %c0_6] : memref<2x4x16x16xf32, #tpu.memory_space<vmem>>, vector<2x4x16x16xf32>
    tpu.vector_store %arg3[%c0_3, %c0_4, %c0_5, %c0_6], %0 {strides = array<i32>} : memref<2x4x16x16xf32, #tpu.memory_space<vmem>>, vector<2x4x16x16xf32>,
    %c0_7 = arith.constant 0 : index
    %c0_8 = arith.constant 0 : index
    %c0_9 = arith.constant 0 : index
    %2 = vector.load %arg2[%c0_7, %c0_8, %c0_9] : memref<2x8x32xf32, #tpu.memory_space<vmem>>, vector<2x8x32xf32>
    %c0_10 = arith.constant 0 : index
    %c0_11 = arith.constant 0 : index
    %c0_12 = arith.constant 0 : index
    %3 = vector.load %arg4[%c0_10, %c0_11, %c0_12] : memref<2x8x32xf32, #tpu.memory_space<vmem>>, vector<2x8x32xf32>
    tpu.vector_store %arg4[%c0_10, %c0_11, %c0_12], %2 {strides = array<i32>} : memref<2x8x32xf32, #tpu.memory_space<vmem>>, vector<2x8x32xf32>,
    return
  }
  func.func @transform_0(%arg0: i32) -> (i32, i32, i32, i32) {
    %c0_i32 = arith.constant 0 : i32
    %c0_i32_0 = arith.constant 0 : i32
    %c0_i32_1 = arith.constant 0 : i32
    %c0_i32_2 = arith.constant 0 : i32
    %c0_i32_3 = arith.constant 0 : i32
    return %c0_i32, %c0_i32_0, %c0_i32_1, %c0_i32_2 : i32, i32, i32, i32
  }
  func.func @transform_1(%arg0: i32) -> (i32, i32, i32) {
    %c0_i32 = arith.constant 0 : i32
    %c0_i32_0 = arith.constant 0 : i32
    %c0_i32_1 = arith.constant 0 : i32
    %c0_i32_2 = arith.constant 0 : i32
    return %c0_i32, %c0_i32_0, %c0_i32_1 : i32, i32, i32
  }
  func.func @transform_2(%arg0: i32) -> (i32, i32, i32, i32) {
    %c0_i32 = arith.constant 0 : i32
    %c0_i32_0 = arith.constant 0 : i32
    %c0_i32_1 = arith.constant 0 : i32
    %c0_i32_2 = arith.constant 0 : i32
    %c0_i32_3 = arith.constant 0 : i32
    return %c0_i32, %c0_i32_0, %c0_i32_1, %c0_i32_2 : i32, i32, i32, i32
  }
  func.func @transform_3(%arg0: i32) -> (i32, i32, i32) {
    %c0_i32 = arith.constant 0 : i32
    %c0_i32_0 = arith.constant 0 : i32
    %c0_i32_1 = arith.constant 0 : i32
    %c0_i32_2 = arith.constant 0 : i32
    return %c0_i32, %c0_i32_0, %c0_i32_1 : i32, i32, i32
  }
}

</mosaic_0001>

<llo_original>
// kernel: tpu_custom_call.1
$region0: #{tpu_custom_call.1}
  #allocation0 [shape = 'u32[]', space=smem, size = 0x4, offset = 0x4, fixed_abs, tag = 'smem constant byte address 0x4 - core index']
  #allocation1 [shape = 'u32[144,128]{1,0:T(1,128)}', space=vmem, size = 0x12000, scoped, tag = 'internal scratch']
  %s0 = inlined_call_operand.hbm [shape: f32[2,4,16,16], index: 0, kind: input, shape index: {}]
  %s1 = inlined_call_operand.hbm [shape: f32[2,8,32], index: 1, kind: input, shape index: {}]
  %s2 = inlined_call_operand.hbm [shape: f32[2,4,16,16], index: 2, kind: output, shape index: {0}]
  %s3 = inlined_call_operand.hbm [shape: f32[2,8,32], index: 3, kind: output, shape index: {1}]
  %4 = xla_tuple %s2, %s3
  %s5 = sld [smem:[#allocation0]]
  $region34: #{tpu_custom_call.1} parent=0
    _
  %s7 = ssub.s32 1, %s5
  %s8 = scalar_select 0, %s7, %s5
  $region1: #{tpu_custom_call.1} parent=0
    #allocation2 [shape = 'u8[65536]{0}', space=vmem, size = 0x10000, scoped, tag = 'input window, operand 0, single buffered']
    #allocation3 [shape = 's32[1]{0}', space=sflag, size = 0x4, scoped, tag = 'scoped memory for tpu_custom_call.1']
    #allocation4 [shape = 's32[1]{0}', space=sflag, size = 0x4, scoped, tag = 'scoped memory for tpu_custom_call.1']
    #allocation5 [shape = 'u8[8192]{0}', space=vmem, size = 0x2000, scoped, tag = 'input window, operand 1, single buffered']
    #allocation6 [shape = 's32[1]{0}', space=sflag, size = 0x4, scoped, tag = 'scoped memory for tpu_custom_call.1']
    #allocation7 [shape = 'u8[65536]{0}', space=vmem, size = 0x10000, scoped, tag = 'output window, operand 0, single buffered']
    #allocation8 [shape = 'u8[8192]{0}', space=vmem, size = 0x2000, scoped, tag = 'output window, operand 1, single buffered']
    #allocation9 [shape = 's32[1]{0}', space=sflag, size = 0x4, scoped, tag = 'scoped memory for tpu_custom_call.1']
    %9 = vsyncpa [#allocation3], 0
    %10 = vsyncpa [#allocation6], 0
    %11 = vsyncpa [#allocation4], 0
    %12 = vsyncpa [#allocation9], 0
    // Predicated region
    $region2: #{tpu_custom_call.1} parent=1 // pred_check
      _
    $region3: #{tpu_custom_call.1} parent=1 // pred_check_branch
      %14 = sbr.rel (0) target = $region5
    $region4: #{tpu_custom_call.1} parent=1 // pred_region
      %s16 = ssub.s32 2048, 2048
      %17 = vsyncadd [#allocation3], %s16
      %s18 = sshll.u32 [#allocation2], 4
      %s19 = int_to_ptr.vmem [resolvable:$true] %s18
      %24 = dma.hbm_to_vmem [thread:$0]  %s0, 2048, %s19, [#allocation3], 128, 128, 8
    $region5: #{tpu_custom_call.1} parent=1 // pred_fallthru
      _
    // Predicated region
    $region6: #{tpu_custom_call.1} parent=1 // pred_check
      _
    $region7: #{tpu_custom_call.1} parent=1 // pred_check_branch
      %26 = sbr.rel (0) target = $region9
    $region8: #{tpu_custom_call.1} parent=1 // pred_region
      %s28 = ssub.s32 256, 256
      %29 = vsyncadd [#allocation6], %s28
      %s30 = sshll.u32 [#allocation5], 4
      %s31 = int_to_ptr.vmem [resolvable:$true] %s30
      %36 = dma.hbm_to_vmem [thread:$0]  %s1, 256, %s31, [#allocation6], 128, 128, 8
    $region9: #{tpu_custom_call.1} parent=1 // pred_fallthru
      _
    // Predicated region
    $region10: #{tpu_custom_call.1} parent=1 // pred_check
      _
    $region11: #{tpu_custom_call.1} parent=1 // pred_check_branch
      %38 = sbr.rel (0) target = $region13
    $region12: #{tpu_custom_call.1} parent=1 // pred_region
      %39 = dma.done [#allocation3], 2048
    $region13: #{tpu_custom_call.1} parent=1 // pred_fallthru
      _
    // Predicated region
    $region14: #{tpu_custom_call.1} parent=1 // pred_check
      _
    $region15: #{tpu_custom_call.1} parent=1 // pred_check_branch
      %41 = sbr.rel (0) target = $region17
    $region16: #{tpu_custom_call.1} parent=1 // pred_region
      %42 = dma.done [#allocation6], 256
    $region17: #{tpu_custom_call.1} parent=1 // pred_fallthru
      _
    %v43 = vld [vmem:[#allocation2] sm:$0xff]
    %v44 = vld [vmem:[#allocation2 + $0x8] sm:$0xff]
    %v45 = vld [vmem:[#allocation2 + $0x10] sm:$0xff]
    %v46 = vld [vmem:[#allocation2 + $0x18] sm:$0xff]
    %v47 = vld [vmem:[#allocation2 + $0x20] sm:$0xff]
    %v48 = vld [vmem:[#allocation2 + $0x28] sm:$0xff]
    %v49 = vld [vmem:[#allocation2 + $0x30] sm:$0xff]
    %v50 = vld [vmem:[#allocation2 + $0x38] sm:$0xff]
    %v51 = vld [vmem:[#allocation2 + $0x40] sm:$0xff]
    %v52 = vld [vmem:[#allocation2 + $0x48] sm:$0xff]
    %v53 = vld [vmem:[#allocation2 + $0x50] sm:$0xff]
    %v54 = vld [vmem:[#allocation2 + $0x58] sm:$0xff]
    %v55 = vld [vmem:[#allocation2 + $0x60] sm:$0xff]
    %v56 = vld [vmem:[#allocation2 + $0x68] sm:$0xff]
    %v57 = vld [vmem:[#allocation2 + $0x70] sm:$0xff]
    %v58 = vld [vmem:[#allocation2 + $0x78] sm:$0xff]
    %vm59 = vcmask 130048
    %60 = vst.msk [vmem:[#allocation7] sm:$0xff] %vm59, %v43
    %61 = vst.msk [vmem:[#allocation7 + $0x8] sm:$0xff] %vm59, %v44
    %62 = vst.msk [vmem:[#allocation7 + $0x10] sm:$0xff] %vm59, %v45
    %63 = vst.msk [vmem:[#allocation7 + $0x18] sm:$0xff] %vm59, %v46
    %64 = vst.msk [vmem:[#allocation7 + $0x20] sm:$0xff] %vm59, %v47
    %65 = vst.msk [vmem:[#allocation7 + $0x28] sm:$0xff] %vm59, %v48
    %66 = vst.msk [vmem:[#allocation7 + $0x30] sm:$0xff] %vm59, %v49
    %67 = vst.msk [vmem:[#allocation7 + $0x38] sm:$0xff] %vm59, %v50
    %68 = vst.msk [vmem:[#allocation7 + $0x40] sm:$0xff] %vm59, %v51
    %69 = vst.msk [vmem:[#allocation7 + $0x48] sm:$0xff] %vm59, %v52
    %70 = vst.msk [vmem:[#allocation7 + $0x50] sm:$0xff] %vm59, %v53
    %71 = vst.msk [vmem:[#allocation7 + $0x58] sm:$0xff] %vm59, %v54
    %72 = vst.msk [vmem:[#allocation7 + $0x60] sm:$0xff] %vm59, %v55
    %73 = vst.msk [vmem:[#allocation7 + $0x68] sm:$0xff] %vm59, %v56
    %74 = vst.msk [vmem:[#allocation7 + $0x70] sm:$0xff] %vm59, %v57
    %75 = vst.msk [vmem:[#allocation7 + $0x78] sm:$0xff] %vm59, %v58
    %v76 = vld [vmem:[#allocation5] sm:$0xff]
    %v77 = vld [vmem:[#allocation5 + $0x8] sm:$0xff]
    %vm78 = vcmask 261120
    %79 = vst.msk [vmem:[#allocation8] sm:$0xff] %vm78, %v76
    %80 = vst.msk [vmem:[#allocation8 + $0x8] sm:$0xff] %vm78, %v77
    // Predicated region
    $region18: #{tpu_custom_call.1} parent=1 // pred_check
      _
    $region19: #{tpu_custom_call.1} parent=1 // pred_check_branch
      %82 = sbr.rel (0) target = $region21
    $region20: #{tpu_custom_call.1} parent=1 // pred_region
      %s84 = ssub.s32 2048, 2048
      %85 = vsyncadd [#allocation4], %s84
      %s86 = sshll.u32 [#allocation7], 4
      %s87 = int_to_ptr.vmem [resolvable:$true] %s86
      %92 = dma.vmem_to_hbm [thread:$0]  %s87, 2048, %s2, [#allocation4], 128, 128, 8
    $region21: #{tpu_custom_call.1} parent=1 // pred_fallthru
      _
    // Predicated region
    $region22: #{tpu_custom_call.1} parent=1 // pred_check
      _
    $region23: #{tpu_custom_call.1} parent=1 // pred_check_branch
      %94 = sbr.rel (0) target = $region25
    $region24: #{tpu_custom_call.1} parent=1 // pred_region
      %s96 = ssub.s32 256, 256
      %97 = vsyncadd [#allocation9], %s96
      %s98 = sshll.u32 [#allocation8], 4
      %s99 = int_to_ptr.vmem [resolvable:$true] %s98
      %104 = dma.vmem_to_hbm [thread:$0]  %s99, 256, %s3, [#allocation9], 128, 128, 8
    $region25: #{tpu_custom_call.1} parent=1 // pred_fallthru
      _
    // Predicated region
    $region26: #{tpu_custom_call.1} parent=1 // pred_check
      _
    $region27: #{tpu_custom_call.1} parent=1 // pred_check_branch
      %106 = sbr.rel (0) target = $region29
    $region28: #{tpu_custom_call.1} parent=1 // pred_region
      %107 = dma.done [#allocation4], 2048
    $region29: #{tpu_custom_call.1} parent=1 // pred_fallthru
      _
    // Predicated region
    $region30: #{tpu_custom_call.1} parent=1 // pred_check
      _
    $region31: #{tpu_custom_call.1} parent=1 // pred_check_branch
      %109 = sbr.rel (0) target = $region33
    $region32: #{tpu_custom_call.1} parent=1 // pred_region
      %110 = dma.done [#allocation9], 256
    $region33: #{tpu_custom_call.1} parent=1 // pred_fallthru
      _
    %111 = vsyncpa [#allocation3], 1
    %112 = vsyncpa [#allocation6], 1
    %113 = vsyncpa [#allocation4], 1
    %114 = vsyncpa [#allocation9], 1

</llo_original>
